<compile_context>
chip_gen: v7x
topology: tpu7x:2x2x1
jax: 0.10.0
libtpu: 0.0.40
codegen_flags: <defaults>
</compile_context>

<pallas_src>
import functools

import jax
import jax.numpy as jnp
from jax.experimental import pallas as pl
from jax.experimental.pallas import tpu as pltpu

IN_DIM = 28 * 28   # 784
H1 = 256
H2 = 128
OUT_DIM = 10


def mlp_kernel(x_ref, w1_ref, b1_ref, w2_ref, b2_ref, w3_ref, b3_ref, o_ref):
    # x_ref: (bm, 784) in its stored dtype (f32 by default).
    # w*_ref: (in, out) f32 or bf16; b*_ref: (1, out) f32; o_ref: (bm, 10) f32.
    #
    # Cast x to the weight dtype *inside* the kernel (VMEM) so the bf16 path
    # never materializes a second copy of x in HBM.
    x = x_ref[...].astype(w1_ref.dtype)

    # Layer 1: Linear(784 -> 256) + ReLU  (MXU matmul, f32 accumulation)
    h1 = jnp.dot(x, w1_ref[...], preferred_element_type=jnp.float32) + b1_ref[...]
    h1 = jnp.maximum(h1, 0.0)

    # Layer 2: Linear(256 -> 128) + ReLU
    h2 = jnp.dot(h1.astype(w2_ref.dtype), w2_ref[...],
                 preferred_element_type=jnp.float32) + b2_ref[...]
    h2 = jnp.maximum(h2, 0.0)

    # Layer 3: Linear(128 -> 10). Output block's last dim equals the full array
    # dim (10), so the (masked) store is legal and tiny (40 B/sample).
    o_ref[...] = (
        jnp.dot(h2.astype(w3_ref.dtype), w3_ref[...],
                preferred_element_type=jnp.float32) + b3_ref[...]
    ).astype(o_ref.dtype)


def prepare_params(params, *, use_bf16=False):
    """One-time parameter prep: transpose weights to (in, out).

    Biases stay f32 (bias add happens on the f32 accumulator). With
    use_bf16=True only the weights are stored in bf16 (preferred on MXU-bound
    v5e; on v6e/v7x it mainly saves a little weight traffic/VMEM)."""
    w1, b1, w2, b2, w3, b3 = params
    wdtype = jnp.bfloat16 if use_bf16 else jnp.float32
    return (
        w1.T.astype(wdtype),                          # (784, 256)
        b1.reshape(1, H1).astype(jnp.float32),
        w2.T.astype(wdtype),                          # (256, 128)
        b2.reshape(1, H2).astype(jnp.float32),
        w3.T.astype(wdtype),                          # (128, 10)
        b3.reshape(1, OUT_DIM).astype(jnp.float32),
    )


def _choose_bm(B, bm):
    """Static (trace-time) choice of the batch tile."""
    bm = min(bm, 4096)                       # VMEM safety ceiling (v7x: 64 MiB)
    # Keep >= 4 grid steps (2 per v7x TensorCore) when the batch is large
    # enough that the tile stays comfortably above the overhead knee.
    if B >= 4 * 256:
        bm = min(bm, pl.cdiv(B, 4))
    if B <= bm:
        # Single block covering the whole batch: block dim == array dim is
        # always layout-legal and avoids any out-of-bounds rows.
        return B
    # Multi-block: align to 16 rows (f32 sublanes + bf16 sublane packing).
    bm_eff = max(16, (bm // 16) * 16)
    grid_b = pl.cdiv(B, bm_eff)
    # v7x shards the "parallel" batch axis across 2 TensorCores: prefer an even
    # number of grid steps so neither core sits idle for a whole step.
    if grid_b % 2 == 1:
        cand = ((pl.cdiv(B, grid_b + 1) + 15) // 16) * 16
        if cand >= max(128, bm_eff // 2) and pl.cdiv(B, cand) % 2 == 0:
            bm_eff = cand
    return bm_eff


@functools.partial(jax.jit, static_argnames=("bm",))
def mlp_forward(x_nchw, prepared_params, *, bm=1024):
    """x_nchw: (B, 1, 28, 28). prepared_params: output of prepare_params().
    Returns (B, 10) f32 logits."""
    w1_t, b1_2d, w2_t, b2_2d, w3_t, b3_2d = prepared_params
    B = x_nchw.shape[0]

    # nn.Flatten(): (B, 1, 28, 28) -> (B, 784). No dtype cast and no padding
    # here: x streams straight from HBM; the trailing partial block (if any) is
    # handled by Pallas' padded-read / masked-write semantics.
    # Note: storing the dataset in bf16/u8 would halve/quarter the x stream.
    x = x_nchw.reshape(B, IN_DIM)

    bm_eff = _choose_bm(B, bm)
    grid_b = pl.cdiv(B, bm_eff)

    x_itemsize = jnp.dtype(x.dtype).itemsize
    w_itemsize = jnp.dtype(w1_t.dtype).itemsize
    n_w = IN_DIM * H1 + H1 * H2 + H2 * OUT_DIM
    n_b = H1 + H2 + OUT_DIM

    flops = 2 * B * n_w
    bytes_accessed = (
        B * IN_DIM * x_itemsize       # x stream (dominant operand)
        + n_w * w_itemsize            # weights (read once, VMEM-resident)
        + n_b * 4                     # biases
        + B * OUT_DIM * 4             # logits writeback
    )

    # Per-call VMEM footprint estimate: double-buffered x/out tiles, resident
    # (double-buffered) weights + biases, and the h1/h2 intermediates.
    vmem_est = (
        2 * bm_eff * IN_DIM * x_itemsize
        + 2 * bm_eff * OUT_DIM * 4
        + bm_eff * (H1 + H2) * 4
        + 2 * (n_w * w_itemsize + n_b * 4)
    )
    cp_kwargs = dict(dimension_semantics=("parallel",))
    if vmem_est > 30 * 1024 * 1024:
        cp_kwargs["vmem_limit_bytes"] = min(vmem_est * 5 // 4, 48 * 1024 * 1024)

    out = pl.pallas_call(
        mlp_kernel,
        out_shape=jax.ShapeDtypeStruct((B, OUT_DIM), jnp.float32),
        grid_spec=pltpu.PrefetchScalarGridSpec(
            num_scalar_prefetch=0,
            grid=(grid_b,),
            in_specs=[
                # activations tiled over the batch (only streamed operand)
                pl.BlockSpec((bm_eff, IN_DIM), lambda i: (i, 0)),
                # weights / biases: full arrays, VMEM-resident (constant index)
                pl.BlockSpec((IN_DIM, H1), lambda i: (0, 0)),
                pl.BlockSpec((1, H1), lambda i: (0, 0)),
                pl.BlockSpec((H1, H2), lambda i: (0, 0)),
                pl.BlockSpec((1, H2), lambda i: (0, 0)),
                pl.BlockSpec((H2, OUT_DIM), lambda i: (0, 0)),
                pl.BlockSpec((1, OUT_DIM), lambda i: (0, 0)),
            ],
            out_specs=pl.BlockSpec((bm_eff, OUT_DIM), lambda i: (i, 0)),
        ),
        compiler_params=pltpu.CompilerParams(**cp_kwargs),
        cost_estimate=pl.CostEstimate(
            flops=flops, transcendentals=0, bytes_accessed=bytes_accessed),
    )(x, w1_t, b1_2d, w2_t, b2_2d, w3_t, b3_2d)

    return out  # already (B, 10); no wrapper slice / extra HBM pass


def init_params(key):
    """Deterministic parameter init; shapes match the PyTorch module exactly."""
    k1, k2, k3 = jax.random.split(key, 3)

    def linear_init(k, fan_in, fan_out):
        bound = 1.0 / jnp.sqrt(fan_in)
        kw, kb = jax.random.split(k)
        w = jax.random.uniform(kw, (fan_out, fan_in), jnp.float32, -bound, bound)
        b = jax.random.uniform(kb, (fan_out,), jnp.float32, -bound, bound)
        return w, b

    w1, b1 = linear_init(k1, IN_DIM, H1)   # (256, 784), (256,)
    w2, b2 = linear_init(k2, H1, H2)       # (128, 256), (128,)
    w3, b3 = linear_init(k3, H2, OUT_DIM)  # (10, 128),  (10,)
    return (w1, b1, w2, b2, w3, b3)


def mlp_reference(x_nchw, params):
    """Pure-JAX reference matching PyTorch semantics."""
    w1, b1, w2, b2, w3, b3 = params
    x = x_nchw.reshape(x_nchw.shape[0], IN_DIM)
    h1 = jnp.maximum(x @ w1.T + b1, 0.0)
    h2 = jnp.maximum(h1 @ w2.T + b2, 0.0)
    return h2 @ w3.T + b3


if __name__ == "__main__":
    key = jax.random.PRNGKey(0)
    kx, kp = jax.random.split(key)

    params = init_params(kp)

    # --- small batch, exact f32 path (default) ---
    B = 8
    x = jax.random.normal(kx, (B, 1, 28, 28), dtype=jnp.float32)  # NCHW MNIST-like
    ref = mlp_reference(x, params)

    prepared_f32 = prepare_params(params, use_bf16=False)
    out = jax.block_until_ready(mlp_forward(x, prepared_f32))
    assert out.shape == (B, OUT_DIM)
    assert jnp.allclose(out, ref, atol=1e-4, rtol=1e-4), "f32 mismatch vs reference"

    # --- bf16-weight path (f32 accumulation; x cast happens in-kernel) ---
    prepared_bf16 = prepare_params(params, use_bf16=True)
    out_bf16 = jax.block_until_ready(mlp_forward(x, prepared_bf16))
    assert out_bf16.shape == (B, OUT_DIM)
    assert jnp.allclose(out_bf16, ref, atol=1e-1, rtol=1e-1), "bf16 mismatch vs reference"

    # --- ragged batch / multi-step grid: exercises the masked trailing block ---
    B2 = 40
    x2 = jax.random.normal(kx, (B2, 1, 28, 28), dtype=jnp.float32)
    ref2 = mlp_reference(x2, params)
    out2 = jax.block_until_ready(mlp_forward(x2, prepared_f32, bm=16))
    assert out2.shape == (B2, OUT_DIM)
    assert jnp.allclose(out2, ref2, atol=1e-4, rtol=1e-4), "ragged-batch mismatch"

    print("KERNEL_OK")
</pallas_src>

<mosaic_0001>
module attributes {stable_mosaic.version = 11 : i64} {
  func.func @mlp_kernel(%arg0: i32, %arg1: memref<8x784xf32, #tpu.memory_space<vmem>>, %arg2: memref<784x256xf32, #tpu.memory_space<vmem>>, %arg3: memref<1x256xf32, #tpu.memory_space<vmem>>, %arg4: memref<256x128xf32, #tpu.memory_space<vmem>>, %arg5: memref<1x128xf32, #tpu.memory_space<vmem>>, %arg6: memref<128x10xf32, #tpu.memory_space<vmem>>, %arg7: memref<1x10xf32, #tpu.memory_space<vmem>>, %arg8: memref<8x10xf32, #tpu.memory_space<vmem>>) attributes {dimension_semantics = [#tpu.dimension_semantics<parallel>], iteration_bounds = array<i64: 1>, scalar_prefetch = 0 : i64, scratch_operands = 0 : i64, tpu.core_type = #tpu.core_type<tc>, window_params = [{transform_indices = @transform_0, window_bounds = array<i64: 8, 784>}, {pipeline_mode = #tpu.pipeline_mode<synchronous>, transform_indices = @transform_1, window_bounds = array<i64: 784, 256>}, {pipeline_mode = #tpu.pipeline_mode<synchronous>, transform_indices = @transform_2, window_bounds = array<i64: 1, 256>}, {pipeline_mode = #tpu.pipeline_mode<synchronous>, transform_indices = @transform_3, window_bounds = array<i64: 256, 128>}, {pipeline_mode = #tpu.pipeline_mode<synchronous>, transform_indices = @transform_4, window_bounds = array<i64: 1, 128>}, {pipeline_mode = #tpu.pipeline_mode<synchronous>, transform_indices = @transform_5, window_bounds = array<i64: 128, 10>}, {pipeline_mode = #tpu.pipeline_mode<synchronous>, transform_indices = @transform_6, window_bounds = array<i64: 1, 10>}, {transform_indices = @transform_7, window_bounds = array<i64: 8, 10>}]} {
    %c0 = arith.constant 0 : index
    %c0_0 = arith.constant 0 : index
    %0 = vector.load %arg1[%c0, %c0_0] : memref<8x784xf32, #tpu.memory_space<vmem>>, vector<8x784xf32>
    %c0_1 = arith.constant 0 : index
    %c0_2 = arith.constant 0 : index
    %1 = vector.load %arg2[%c0_1, %c0_2] : memref<784x256xf32, #tpu.memory_space<vmem>>, vector<784x256xf32>
    %cst = arith.constant dense<0.000000e+00> : vector<8x256xf32>
    %2 = tpu.matmul %0, %1, %cst {dimension_numbers = #tpu.dot_dimension_numbers<[1], [0], [0], [1], [0, 0, 1, 1], [], []>} : vector<8x784xf32>, vector<784x256xf32>, vector<8x256xf32> -> vector<8x256xf32>
    %c0_3 = arith.constant 0 : index
    %c0_4 = arith.constant 0 : index
    %3 = vector.load %arg3[%c0_3, %c0_4] : memref<1x256xf32, #tpu.memory_space<vmem>>, vector<1x256xf32>
    %4 = vector.broadcast %3 : vector<1x256xf32> to vector<8x256xf32>
    %5 = arith.addf %2, %4 : vector<8x256xf32>
    %cst_5 = arith.constant 0.000000e+00 : f32
    %6 = vector.broadcast %cst_5 : f32 to vector<8x256xf32>
    %7 = arith.maximumf %5, %6 : vector<8x256xf32>
    %c0_6 = arith.constant 0 : index
    %c0_7 = arith.constant 0 : index
    %8 = vector.load %arg4[%c0_6, %c0_7] : memref<256x128xf32, #tpu.memory_space<vmem>>, vector<256x128xf32>
    %cst_8 = arith.constant dense<0.000000e+00> : vector<8x128xf32>
    %9 = tpu.matmul %7, %8, %cst_8 {dimension_numbers = #tpu.dot_dimension_numbers<[1], [0], [0], [1], [0, 0, 1, 1], [], []>} : vector<8x256xf32>, vector<256x128xf32>, vector<8x128xf32> -> vector<8x128xf32>
    %c0_9 = arith.constant 0 : index
    %c0_10 = arith.constant 0 : index
    %10 = vector.load %arg5[%c0_9, %c0_10] : memref<1x128xf32, #tpu.memory_space<vmem>>, vector<1x128xf32>
    %11 = vector.broadcast %10 : vector<1x128xf32> to vector<8x128xf32>
    %12 = arith.addf %9, %11 : vector<8x128xf32>
    %cst_11 = arith.constant 0.000000e+00 : f32
    %13 = vector.broadcast %cst_11 : f32 to vector<8x128xf32>
    %14 = arith.maximumf %12, %13 : vector<8x128xf32>
    %c0_12 = arith.constant 0 : index
    %c0_13 = arith.constant 0 : index
    %15 = vector.load %arg6[%c0_12, %c0_13] : memref<128x10xf32, #tpu.memory_space<vmem>>, vector<128x10xf32>
    %cst_14 = arith.constant dense<0.000000e+00> : vector<8x10xf32>
    %16 = tpu.matmul %14, %15, %cst_14 {dimension_numbers = #tpu.dot_dimension_numbers<[1], [0], [0], [1], [0, 0, 1, 1], [], []>} : vector<8x128xf32>, vector<128x10xf32>, vector<8x10xf32> -> vector<8x10xf32>
    %c0_15 = arith.constant 0 : index
    %c0_16 = arith.constant 0 : index
    %17 = vector.load %arg7[%c0_15, %c0_16] : memref<1x10xf32, #tpu.memory_space<vmem>>, vector<1x10xf32>
    %18 = vector.broadcast %17 : vector<1x10xf32> to vector<8x10xf32>
    %19 = arith.addf %16, %18 : vector<8x10xf32>
    %c0_17 = arith.constant 0 : index
    %c0_18 = arith.constant 0 : index
    %20 = vector.load %arg8[%c0_17, %c0_18] : memref<8x10xf32, #tpu.memory_space<vmem>>, vector<8x10xf32>
    tpu.vector_store %arg8[%c0_17, %c0_18], %19 {strides = array<i32>} : memref<8x10xf32, #tpu.memory_space<vmem>>, vector<8x10xf32>,
    return
  }
  func.func @transform_0(%arg0: i32) -> (i32, i32) {
    %c0_i32 = arith.constant 0 : i32
    %c0_i32_0 = arith.constant 0 : i32
    return %arg0, %c0_i32 : i32, i32
  }
  func.func @transform_1(%arg0: i32) -> (i32, i32) {
    %c0_i32 = arith.constant 0 : i32
    %c0_i32_0 = arith.constant 0 : i32
    %c0_i32_1 = arith.constant 0 : i32
    return %c0_i32, %c0_i32_0 : i32, i32
  }
  func.func @transform_2(%arg0: i32) -> (i32, i32) {
    %c0_i32 = arith.constant 0 : i32
    %c0_i32_0 = arith.constant 0 : i32
    %c0_i32_1 = arith.constant 0 : i32
    return %c0_i32, %c0_i32_0 : i32, i32
  }
  func.func @transform_3(%arg0: i32) -> (i32, i32) {
    %c0_i32 = arith.constant 0 : i32
    %c0_i32_0 = arith.constant 0 : i32
    %c0_i32_1 = arith.constant 0 : i32
    return %c0_i32, %c0_i32_0 : i32, i32
  }
  func.func @transform_4(%arg0: i32) -> (i32, i32) {
    %c0_i32 = arith.constant 0 : i32
    %c0_i32_0 = arith.constant 0 : i32
    %c0_i32_1 = arith.constant 0 : i32
    return %c0_i32, %c0_i32_0 : i32, i32
  }
  func.func @transform_5(%arg0: i32) -> (i32, i32) {
    %c0_i32 = arith.constant 0 : i32
    %c0_i32_0 = arith.constant 0 : i32
    %c0_i32_1 = arith.constant 0 : i32
    return %c0_i32, %c0_i32_0 : i32, i32
  }
  func.func @transform_6(%arg0: i32) -> (i32, i32) {
    %c0_i32 = arith.constant 0 : i32
    %c0_i32_0 = arith.constant 0 : i32
    %c0_i32_1 = arith.constant 0 : i32
    return %c0_i32, %c0_i32_0 : i32, i32
  }
  func.func @transform_7(%arg0: i32) -> (i32, i32) {
    %c0_i32 = arith.constant 0 : i32
    %c0_i32_0 = arith.constant 0 : i32
    return %arg0, %c0_i32 : i32, i32
  }
}

</mosaic_0001>

<llo_original>
// kernel: mlp_forward.1
$region0: #{mlp_forward.1}
  #allocation0 [shape = 'u32[]', space=smem, size = 0x4, offset = 0x4, fixed_abs, tag = 'smem constant byte address 0x4 - core index']
  #allocation1 [shape = 'u32[144,128]{1,0:T(1,128)}', space=vmem, size = 0x12000, scoped, tag = 'internal scratch']
  %s0 = inlined_call_operand.vmem [shape: f32[8,784], index: 0, kind: input, shape index: {}]
  %s1 = inlined_call_operand.hbm [shape: f32[784,256], index: 1, kind: input, shape index: {}]
  %s2 = inlined_call_operand.vmem [shape: f32[1,256], index: 2, kind: input, shape index: {}]
  %s3 = inlined_call_operand.vmem [shape: f32[256,128], index: 3, kind: input, shape index: {}]
  %s4 = inlined_call_operand.vmem [shape: f32[1,128], index: 4, kind: input, shape index: {}]
  %s5 = inlined_call_operand.vmem [shape: f32[128,10], index: 5, kind: input, shape index: {}]
  %s6 = inlined_call_operand.vmem [shape: f32[1,10], index: 6, kind: input, shape index: {}]
  %s7 = inlined_call_operand.hbm [shape: f32[8,10], index: 7, kind: output, shape index: {}]
  %s8 = sld [smem:[#allocation0]]
  $region42: #{mlp_forward.1} parent=0
    _
  %s10 = ssub.s32 1, %s8
  %s11 = scalar_select 0, %s10, %s8
  $region1: #{mlp_forward.1} parent=0
    #allocation2 [shape = 'u8[802816]{0}', space=vmem, size = 0xc4000, scoped, tag = 'input window, operand 1, single buffered']
    #allocation3 [shape = 's32[1]{0}', space=sflag, size = 0x4, scoped, tag = 'scoped memory for mlp_forward.1']
    #allocation4 [shape = 's32[1]{0}', space=sflag, size = 0x4, scoped, tag = 'scoped memory for mlp_forward.1']
    #allocation5 [shape = 'u8[4096]{0}', space=vmem, size = 0x1000, scoped, tag = 'output window, operand 0, single buffered']
    %12 = vsyncpa [#allocation3], 0
    %13 = vsyncpa [#allocation4], 0
    // Predicated region
    $region2: #{mlp_forward.1} parent=1 // pred_check
      _
    $region3: #{mlp_forward.1} parent=1 // pred_check_branch
      %15 = sbr.rel (0) target = $region5
    $region4: #{mlp_forward.1} parent=1 // pred_region
      _
    $region5: #{mlp_forward.1} parent=1 // pred_fallthru
      _
    // Predicated region
    $region6: #{mlp_forward.1} parent=1 // pred_check
      _
    $region7: #{mlp_forward.1} parent=1 // pred_check_branch
      %17 = sbr.rel (0) target = $region9
    $region8: #{mlp_forward.1} parent=1 // pred_region
      %s19 = ssub.s32 25088, 25088
      %20 = vsyncadd [#allocation3], %s19
      %s21 = sshll.u32 [#allocation2], 4
      %s22 = int_to_ptr.vmem [resolvable:$true] %s21
      %27 = dma.hbm_to_vmem [thread:$0]  %s1, 25088, %s22, [#allocation3], 256, 256, 16
    $region9: #{mlp_forward.1} parent=1 // pred_fallthru
      _
    // Predicated region
    $region10: #{mlp_forward.1} parent=1 // pred_check
      _
    $region11: #{mlp_forward.1} parent=1 // pred_check_branch
      %29 = sbr.rel (0) target = $region13
    $region12: #{mlp_forward.1} parent=1 // pred_region
      _
    $region13: #{mlp_forward.1} parent=1 // pred_fallthru
      _
    // Predicated region
    $region14: #{mlp_forward.1} parent=1 // pred_check
      _
    $region15: #{mlp_forward.1} parent=1 // pred_check_branch
      %31 = sbr.rel (0) target = $region17
    $region16: #{mlp_forward.1} parent=1 // pred_region
      _
    $region17: #{mlp_forward.1} parent=1 // pred_fallthru
      _
    // Predicated region
    $region18: #{mlp_forward.1} parent=1 // pred_check
      _
    $region19: #{mlp_forward.1} parent=1 // pred_check_branch
      %33 = sbr.rel (0) target = $region21
    $region20: #{mlp_forward.1} parent=1 // pred_region
      _
    $region21: #{mlp_forward.1} parent=1 // pred_fallthru
      _
    // Predicated region
    $region22: #{mlp_forward.1} parent=1 // pred_check
      _
    $region23: #{mlp_forward.1} parent=1 // pred_check_branch
      %35 = sbr.rel (0) target = $region25
    $region24: #{mlp_forward.1} parent=1 // pred_region
      _
    $region25: #{mlp_forward.1} parent=1 // pred_fallthru
      _
    // Predicated region
    $region26: #{mlp_forward.1} parent=1 // pred_check
      _
    $region27: #{mlp_forward.1} parent=1 // pred_check_branch
      %37 = sbr.rel (0) target = $region29
    $region28: #{mlp_forward.1} parent=1 // pred_region
      _
    $region29: #{mlp_forward.1} parent=1 // pred_fallthru
      _
    // Predicated region
    $region30: #{mlp_forward.1} parent=1 // pred_check
      _
    $region31: #{mlp_forward.1} parent=1 // pred_check_branch
      %39 = sbr.rel (0) target = $region33
    $region32: #{mlp_forward.1} parent=1 // pred_region
      %40 = dma.done [#allocation3], 25088
    $region33: #{mlp_forward.1} parent=1 // pred_fallthru
      _
    %v41 = vld [vmem:[%s0] sm:$0xff]
    %v42 = vld [vmem:[%s0 + $0x8] sm:$0xff]
    %v43 = vld [vmem:[%s0 + $0x10] sm:$0xff]
    %v44 = vld [vmem:[%s0 + $0x18] sm:$0xff]
    %v45 = vld [vmem:[%s0 + $0x20] sm:$0xff]
    %v46 = vld [vmem:[%s0 + $0x28] sm:$0xff]
    %v47 = vld [vmem:[%s0 + $0x30] sm:$0xff]
    %v48 = vld [vmem:[#allocation2] sm:$0xff]
    %v49 = vld [vmem:[#allocation2 + $0x8] sm:$0xff]
    %v50 = vld [vmem:[#allocation2 + $0x10] sm:$0xff]
    %v51 = vld [vmem:[#allocation2 + $0x18] sm:$0xff]
    %v52 = vld [vmem:[#allocation2 + $0x20] sm:$0xff]
    %v53 = vld [vmem:[#allocation2 + $0x28] sm:$0xff]
    %v54 = vld [vmem:[#allocation2 + $0x30] sm:$0xff]
    %v55 = vld [vmem:[#allocation2 + $0x38] sm:$0xff]
    %v56 = vld [vmem:[#allocation2 + $0x40] sm:$0xff]
    %v57 = vld [vmem:[#allocation2 + $0x48] sm:$0xff]
    %v58 = vld [vmem:[#allocation2 + $0x50] sm:$0xff]
    %v59 = vld [vmem:[#allocation2 + $0x58] sm:$0xff]
    %v60 = vld [vmem:[#allocation2 + $0x60] sm:$0xff]
    %v61 = vld [vmem:[#allocation2 + $0x68] sm:$0xff]
    %v62 = vld [vmem:[#allocation2 + $0x70] sm:$0xff]
    %v63 = vld [vmem:[#allocation2 + $0x78] sm:$0xff]
    %v64 = vld [vmem:[#allocation2 + $0x80] sm:$0xff]
    %v65 = vld [vmem:[#allocation2 + $0x88] sm:$0xff]
    %v66 = vld [vmem:[#allocation2 + $0x90] sm:$0xff]
    %v67 = vld [vmem:[#allocation2 + $0x98] sm:$0xff]
    %v68 = vld [vmem:[#allocation2 + $0xa0] sm:$0xff]
    %v69 = vld [vmem:[#allocation2 + $0xa8] sm:$0xff]
    %v70 = vld [vmem:[#allocation2 + $0xb0] sm:$0xff]
    %v71 = vld [vmem:[#allocation2 + $0xb8] sm:$0xff]
    %v72 = vld [vmem:[#allocation2 + $0xc0] sm:$0xff]
    %v73 = vld [vmem:[#allocation2 + $0xc8] sm:$0xff]
    %v74 = vld [vmem:[#allocation2 + $0xd0] sm:$0xff]
    %v75 = vld [vmem:[#allocation2 + $0xd8] sm:$0xff]
    %v76 = vld [vmem:[#allocation2 + $0xe0] sm:$0xff]
    %v77 = vld [vmem:[#allocation2 + $0xe8] sm:$0xff]
    %v78 = vld [vmem:[#allocation2 + $0xf0] sm:$0xff]
    %v79 = vld [vmem:[#allocation2 + $0xf8] sm:$0xff]
    %v80 = vld [vmem:[#allocation2 + $0x100] sm:$0xff]
    %v81 = vld [vmem:[#allocation2 + $0x108] sm:$0xff]
    %v82 = vld [vmem:[#allocation2 + $0x110] sm:$0xff]
    %v83 = vld [vmem:[#allocation2 + $0x118] sm:$0xff]
    %v84 = vld [vmem:[#allocation2 + $0x120] sm:$0xff]
    %v85 = vld [vmem:[#allocation2 + $0x128] sm:$0xff]
    %v86 = vld [vmem:[#allocation2 + $0x130] sm:$0xff]
    %v87 = vld [vmem:[#allocation2 + $0x138] sm:$0xff]
    %v88 = vld [vmem:[#allocation2 + $0x140] sm:$0xff]
    %v89 = vld [vmem:[#allocation2 + $0x148] sm:$0xff]
    %v90 = vld [vmem:[#allocation2 + $0x150] sm:$0xff]
    %v91 = vld [vmem:[#allocation2 + $0x158] sm:$0xff]
    %v92 = vld [vmem:[#allocation2 + $0x160] sm:$0xff]
    %v93 = vld [vmem:[#allocation2 + $0x168] sm:$0xff]
    %v94 = vld [vmem:[#allocation2 + $0x170] sm:$0xff]
    %v95 = vld [vmem:[#allocation2 + $0x178] sm:$0xff]
    %v96 = vld [vmem:[#allocation2 + $0x180] sm:$0xff]
    %v97 = vld [vmem:[#allocation2 + $0x188] sm:$0xff]
    %v98 = vld [vmem:[#allocation2 + $0x190] sm:$0xff]
    %v99 = vld [vmem:[#allocation2 + $0x198] sm:$0xff]
    %v100 = vld [vmem:[#allocation2 + $0x1a0] sm:$0xff]
    %v101 = vld [vmem:[#allocation2 + $0x1a8] sm:$0xff]
    %v102 = vld [vmem:[#allocation2 + $0x1b0] sm:$0xff]
    %v103 = vld [vmem:[#allocation2 + $0x1b8] sm:$0xff]
    %v104 = vld [vmem:[#allocation2 + $0x1c0] sm:$0xff]
    %v105 = vld [vmem:[#allocation2 + $0x1c8] sm:$0xff]
    %v106 = vld [vmem:[#allocation2 + $0x1d0] sm:$0xff]
    %v107 = vld [vmem:[#allocation2 + $0x1d8] sm:$0xff]
    %v108 = vld [vmem:[#allocation2 + $0x1e0] sm:$0xff]
    %v109 = vld [vmem:[#allocation2 + $0x1e8] sm:$0xff]
    %v110 = vld [vmem:[#allocation2 + $0x1f0] sm:$0xff]
    %v111 = vld [vmem:[#allocation2 + $0x1f8] sm:$0xff]
    %v112 = vld [vmem:[#allocation2 + $0x200] sm:$0xff]
    %v113 = vld [vmem:[#allocation2 + $0x208] sm:$0xff]
    %v114 = vld [vmem:[#allocation2 + $0x210] sm:$0xff]
    %v115 = vld [vmem:[#allocation2 + $0x218] sm:$0xff]
    %v116 = vld [vmem:[#allocation2 + $0x220] sm:$0xff]
    %v117 = vld [vmem:[#allocation2 + $0x228] sm:$0xff]
    %v118 = vld [vmem:[#allocation2 + $0x230] sm:$0xff]
    %v119 = vld [vmem:[#allocation2 + $0x238] sm:$0xff]
    %v120 = vld [vmem:[#allocation2 + $0x240] sm:$0xff]
    %v121 = vld [vmem:[#allocation2 + $0x248] sm:$0xff]
    %v122 = vld [vmem:[#allocation2 + $0x250] sm:$0xff]
    %v123 = vld [vmem:[#allocation2 + $0x258] sm:$0xff]
    %v124 = vld [vmem:[#allocation2 + $0x260] sm:$0xff]
    %v125 = vld [vmem:[#allocation2 + $0x268] sm:$0xff]
    %v126 = vld [vmem:[#allocation2 + $0x270] sm:$0xff]
    %v127 = vld [vmem:[#allocation2 + $0x278] sm:$0xff]
    %v128 = vld [vmem:[#allocation2 + $0x280] sm:$0xff]
    %v129 = vld [vmem:[#allocation2 + $0x288] sm:$0xff]
    %v130 = vld [vmem:[#allocation2 + $0x290] sm:$0xff]
    %v131 = vld [vmem:[#allocation2 + $0x298] sm:$0xff]
    %v132 = vld [vmem:[#allocation2 + $0x2a0] sm:$0xff]
    %v133 = vld [vmem:[#allocation2 + $0x2a8] sm:$0xff]
    %v134 = vld [vmem:[#allocation2 + $0x2b0] sm:$0xff]
    %v135 = vld [vmem:[#allocation2 + $0x2b8] sm:$0xff]
    %v136 = vld [vmem:[#allocation2 + $0x2c0] sm:$0xff]
    %v137 = vld [vmem:[#allocation2 + $0x2c8] sm:$0xff]
    %v138 = vld [vmem:[#allocation2 + $0x2d0] sm:$0xff]
    %v139 = vld [vmem:[#allocation2 + $0x2d8] sm:$0xff]
    %v140 = vld [vmem:[#allocation2 + $0x2e0] sm:$0xff]
    %v141 = vld [vmem:[#allocation2 + $0x2e8] sm:$0xff]
    %v142 = vld [vmem:[#allocation2 + $0x2f0] sm:$0xff]
    %v143 = vld [vmem:[#allocation2 + $0x2f8] sm:$0xff]
    %v144 = vld [vmem:[#allocation2 + $0x300] sm:$0xff]
    %v145 = vld [vmem:[#allocation2 + $0x308] sm:$0xff]
    %v146 = vld [vmem:[#allocation2 + $0x310] sm:$0xff]
    %v147 = vld [vmem:[#allocation2 + $0x318] sm:$0xff]
    %v148 = vld [vmem:[#allocation2 + $0x320] sm:$0xff]
    %v149 = vld [vmem:[#allocation2 + $0x328] sm:$0xff]
    %v150 = vld [vmem:[#allocation2 + $0x330] sm:$0xff]
    %v151 = vld [vmem:[#allocation2 + $0x338] sm:$0xff]
    %v152 = vld [vmem:[#allocation2 + $0x340] sm:$0xff]
    %v153 = vld [vmem:[#allocation2 + $0x348] sm:$0xff]
    %v154 = vld [vmem:[#allocation2 + $0x350] sm:$0xff]
    %v155 = vld [vmem:[#allocation2 + $0x358] sm:$0xff]
    %v156 = vld [vmem:[#allocation2 + $0x360] sm:$0xff]
    %v157 = vld [vmem:[#allocation2 + $0x368] sm:$0xff]
    %v158 = vld [vmem:[#allocation2 + $0x370] sm:$0xff]
    %v159 = vld [vmem:[#allocation2 + $0x378] sm:$0xff]
    %v160 = vld [vmem:[#allocation2 + $0x380] sm:$0xff]
    %v161 = vld [vmem:[#allocation2 + $0x388] sm:$0xff]
    %v162 = vld [vmem:[#allocation2 + $0x390] sm:$0xff]
    %v163 = vld [vmem:[#allocation2 + $0x398] sm:$0xff]
    %v164 = vld [vmem:[#allocation2 + $0x3a0] sm:$0xff]
    %v165 = vld [vmem:[#allocation2 + $0x3a8] sm:$0xff]
    %v166 = vld [vmem:[#allocation2 + $0x3b0] sm:$0xff]
    %v167 = vld [vmem:[#allocation2 + $0x3b8] sm:$0xff]
    %v168 = vld [vmem:[#allocation2 + $0x3c0] sm:$0xff]
    %v169 = vld [vmem:[#allocation2 + $0x3c8] sm:$0xff]
    %v170 = vld [vmem:[#allocation2 + $0x3d0] sm:$0xff]
    %v171 = vld [vmem:[#allocation2 + $0x3d8] sm:$0xff]
    %v172 = vld [vmem:[#allocation2 + $0x3e0] sm:$0xff]
    %v173 = vld [vmem:[#allocation2 + $0x3e8] sm:$0xff]
    %v174 = vld [vmem:[#allocation2 + $0x3f0] sm:$0xff]
    %v175 = vld [vmem:[#allocation2 + $0x3f8] sm:$0xff]
    %v176 = vld [vmem:[#allocation2 + $0x400] sm:$0xff]
    %v177 = vld [vmem:[#allocation2 + $0x408] sm:$0xff]
    %v178 = vld [vmem:[#allocation2 + $0x410] sm:$0xff]
    %v179 = vld [vmem:[#allocation2 + $0x418] sm:$0xff]
    %v180 = vld [vmem:[#allocation2 + $0x420] sm:$0xff]
    %v181 = vld [vmem:[#allocation2 + $0x428] sm:$0xff]
    %v182 = vld [vmem:[#allocation2 + $0x430] sm:$0xff]
    %v183 = vld [vmem:[#allocation2 + $0x438] sm:$0xff]
    %v184 = vld [vmem:[#allocation2 + $0x440] sm:$0xff]
    %v185 = vld [vmem:[#allocation2 + $0x448] sm:$0xff]
    %v186 = vld [vmem:[#allocation2 + $0x450] sm:$0xff]
    %v187 = vld [vmem:[#allocation2 + $0x458] sm:$0xff]
    %v188 = vld [vmem:[#allocation2 + $0x460] sm:$0xff]
    %v189 = vld [vmem:[#allocation2 + $0x468] sm:$0xff]
    %v190 = vld [vmem:[#allocation2 + $0x470] sm:$0xff]
    %v191 = vld [vmem:[#allocation2 + $0x478] sm:$0xff]
    %v192 = vld [vmem:[#allocation2 + $0x480] sm:$0xff]
    %v193 = vld [vmem:[#allocation2 + $0x488] sm:$0xff]
    %v194 = vld [vmem:[#allocation2 + $0x490] sm:$0xff]
    %v195 = vld [vmem:[#allocation2 + $0x498] sm:$0xff]
    %v196 = vld [vmem:[#allocation2 + $0x4a0] sm:$0xff]
    %v197 = vld [vmem:[#allocation2 + $0x4a8] sm:$0xff]
    %v198 = vld [vmem:[#allocation2 + $0x4b0] sm:$0xff]
    %v199 = vld [vmem:[#allocation2 + $0x4b8] sm:$0xff]
    %v200 = vld [vmem:[#allocation2 + $0x4c0] sm:$0xff]
    %v201 = vld [vmem:[#allocation2 + $0x4c8] sm:$0xff]
    %v202 = vld [vmem:[#allocation2 + $0x4d0] sm:$0xff]
    %v203 = vld [vmem:[#allocation2 + $0x4d8] sm:$0xff]
    %v204 = vld [vmem:[#allocation2 + $0x4e0] sm:$0xff]
    %v205 = vld [vmem:[#allocation2 + $0x4e8] sm:$0xff]
    %v206 = vld [vmem:[#allocation2 + $0x4f0] sm:$0xff]
    %v207 = vld [vmem:[#allocation2 + $0x4f8] sm:$0xff]
    %v208 = vld [vmem:[#allocation2 + $0x500] sm:$0xff]
    %v209 = vld [vmem:[#allocation2 + $0x508] sm:$0xff]
    %v210 = vld [vmem:[#allocation2 + $0x510] sm:$0xff]
    %v211 = vld [vmem:[#allocation2 + $0x518] sm:$0xff]
    %v212 = vld [vmem:[#allocation2 + $0x520] sm:$0xff]
    %v213 = vld [vmem:[#allocation2 + $0x528] sm:$0xff]
    %v214 = vld [vmem:[#allocation2 + $0x530] sm:$0xff]
    %v215 = vld [vmem:[#allocation2 + $0x538] sm:$0xff]
    %v216 = vld [vmem:[#allocation2 + $0x540] sm:$0xff]
    %v217 = vld [vmem:[#allocation2 + $0x548] sm:$0xff]
    %v218 = vld [vmem:[#allocation2 + $0x550] sm:$0xff]
    %v219 = vld [vmem:[#allocation2 + $0x558] sm:$0xff]
    %v220 = vld [vmem:[#allocation2 + $0x560] sm:$0xff]
    %v221 = vld [vmem:[#allocation2 + $0x568] sm:$0xff]
    %v222 = vld [vmem:[#allocation2 + $0x570] sm:$0xff]
    %v223 = vld [vmem:[#allocation2 + $0x578] sm:$0xff]
    %v224 = vld [vmem:[#allocation2 + $0x580] sm:$0xff]
    %v225 = vld [vmem:[#allocation2 + $0x588] sm:$0xff]
    %v226 = vld [vmem:[#allocation2 + $0x590] sm:$0xff]
    %v227 = vld [vmem:[#allocation2 + $0x598] sm:$0xff]
    %v228 = vld [vmem:[#allocation2 + $0x5a0] sm:$0xff]
    %v229 = vld [vmem:[#allocation2 + $0x5a8] sm:$0xff]
    %v230 = vld [vmem:[#allocation2 + $0x5b0] sm:$0xff]
    %v231 = vld [vmem:[#allocation2 + $0x5b8] sm:$0xff]
    %v232 = vld [vmem:[#allocation2 + $0x5c0] sm:$0xff]
    %v233 = vld [vmem:[#allocation2 + $0x5c8] sm:$0xff]
    %v234 = vld [vmem:[#allocation2 + $0x5d0] sm:$0xff]
    %v235 = vld [vmem:[#allocation2 + $0x5d8] sm:$0xff]
    %v236 = vld [vmem:[#allocation2 + $0x5e0] sm:$0xff]
    %v237 = vld [vmem:[#allocation2 + $0x5e8] sm:$0xff]
    %v238 = vld [vmem:[#allocation2 + $0x5f0] sm:$0xff]
    %v239 = vld [vmem:[#allocation2 + $0x5f8] sm:$0xff]
    %v240 = vld [vmem:[#allocation2 + $0x600] sm:$0xff]
    %v241 = vld [vmem:[#allocation2 + $0x608] sm:$0xff]
    %v242 = vld [vmem:[#allocation2 + $0x610] sm:$0xff]
    %v243 = vld [vmem:[#allocation2 + $0x618] sm:$0xff]
    %v244 = vld [vmem:[%s2] sm:$0x3]
    %v246 = vlaneseq
    %v247 = vshrl.u32 %v246, 7
    %v248 = vsub.s32 0, %v247
    %v249 = vrot.slane %v244, %v248
    %v250 = vlaneseq
    %v251 = vshrl.u32 %v250, 7
    %v252 = vsub.s32 1, %v251
    %v253 = vrot.slane %v244, %v252
    %vm256 = vcmask 130048
    %v258 = vsel %vm256, %v47, 0
    %260 = vmatprep.subr.mxu0 %v49
    %261 = vmatpush1.msra.mxu0 %v48
    %262 = vmatprep.subr.mxu0 %v51
    %263 = vmatpush1.msra.mxu0 %v50
    %264 = vmatprep.subr.mxu0 %v53
    %265 = vmatpush1.msra.mxu0 %v52
    %266 = vmatprep.subr.mxu0 %v55
    %267 = vmatpush1.msra.mxu0 %v54
    %268 = vmatprep.subr.mxu0 %v57
    %269 = vmatpush1.msra.mxu0 %v56
    %270 = vmatprep.subr.mxu0 %v59
    %271 = vmatpush1.msra.mxu0 %v58
    %272 = vmatprep.subr.mxu0 %v61
    %273 = vmatpush1.msra.mxu0 %v60
    %274 = vmatprep.subr.mxu0 %v63
    %275 = vmatpush1.msra.mxu0 %v62
    %276 = vmatprep.subr.mxu0 %v65
    %277 = vmatpush1.msra.mxu0 %v64
    %278 = vmatprep.subr.mxu0 %v67
    %279 = vmatpush1.msra.mxu0 %v66
    %280 = vmatprep.subr.mxu0 %v69
    %281 = vmatpush1.msra.mxu0 %v68
    %282 = vmatprep.subr.mxu0 %v71
    %283 = vmatpush1.msra.mxu0 %v70
    %284 = vmatprep.subr.mxu0 %v73
    %285 = vmatpush1.msra.mxu0 %v72
    %286 = vmatprep.subr.mxu0 %v75
    %287 = vmatpush1.msra.mxu0 %v74
    %288 = vmatprep.subr.mxu0 %v77
    %289 = vmatpush1.msra.mxu0 %v76
    %290 = vmatprep.subr.mxu0 %v79
    %291 = vmatpush1.msra.mxu0 %v78
    %292 = vmatprep.subr.mxu0 %v81
    %293 = vmatpush1.msra.mxu0 %v80
    %294 = vmatprep.subr.mxu0 %v83
    %295 = vmatpush1.msra.mxu0 %v82
    %296 = vmatprep.subr.mxu0 %v85
    %297 = vmatpush1.msra.mxu0 %v84
    %298 = vmatprep.subr.mxu0 %v87
    %299 = vmatpush1.msra.mxu0 %v86
    %300 = vmatprep.subr.mxu0 %v89
    %301 = vmatpush1.msra.mxu0 %v88
    %302 = vmatprep.subr.mxu0 %v91
    %303 = vmatpush1.msra.mxu0 %v90
    %304 = vmatprep.subr.mxu0 %v93
    %305 = vmatpush1.msra.mxu0 %v92
    %306 = vmatprep.subr.mxu0 %v95
    %307 = vmatpush1.msra.mxu0 %v94
    %308 = vmatprep.subr.mxu0 %v97
    %309 = vmatpush1.msra.mxu0 %v96
    %310 = vmatprep.subr.mxu0 %v99
    %311 = vmatpush1.msra.mxu0 %v98
    %312 = vmatprep.subr.mxu0 %v101
    %313 = vmatpush1.msra.mxu0 %v100
    %314 = vmatprep.subr.mxu0 %v103
    %315 = vmatpush1.msra.mxu0 %v102
    %316 = vmatprep.subr.mxu0 %v105
    %317 = vmatpush1.msra.mxu0 %v104
    %318 = vmatprep.subr.mxu0 %v107
    %319 = vmatpush1.msra.mxu0 %v106
    %320 = vmatprep.subr.mxu0 %v109
    %321 = vmatpush1.msra.mxu0 %v108
    %322 = vmatprep.subr.mxu0 %v111
    %323 = vmatpush1.msra.mxu0 %v110
    %324 = vmatprep.mubr.f32.mxu0 %v42
    %325 = vmatmul.mubr.f32.gmra.mrb[0].mxu0 %v41
    %v326 = vpop.f32.mrb[0].mxu0
    %v327 = vadd.f32 %v249, %v326
    %v328 = vpop.f32.mrb[0].mxu0
    %v329 = vadd.f32 %v253, %v328
    %330 = vdwg.mxu0
    %331 = vmatprep.subr.mxu0 %v113
    %332 = vmatpush1.msra.mxu0 %v112
    %333 = vmatprep.subr.mxu0 %v115
    %334 = vmatpush1.msra.mxu0 %v114
    %335 = vmatprep.subr.mxu0 %v117
    %336 = vmatpush1.msra.mxu0 %v116
    %337 = vmatprep.subr.mxu0 %v119
    %338 = vmatpush1.msra.mxu0 %v118
    %339 = vmatprep.subr.mxu0 %v121
    %340 = vmatpush1.msra.mxu0 %v120
    %341 = vmatprep.subr.mxu0 %v123
    %342 = vmatpush1.msra.mxu0 %v122
    %343 = vmatprep.subr.mxu0 %v125
    %344 = vmatpush1.msra.mxu0 %v124
    %345 = vmatprep.subr.mxu0 %v127
    %346 = vmatpush1.msra.mxu0 %v126
    %347 = vmatprep.subr.mxu0 %v129
    %348 = vmatpush1.msra.mxu0 %v128
    %349 = vmatprep.subr.mxu0 %v131
    %350 = vmatpush1.msra.mxu0 %v130
    %351 = vmatprep.subr.mxu0 %v133
    %352 = vmatpush1.msra.mxu0 %v132
    %353 = vmatprep.subr.mxu0 %v135
    %354 = vmatpush1.msra.mxu0 %v134
    %355 = vmatprep.subr.mxu0 %v137
    %356 = vmatpush1.msra.mxu0 %v136
    %357 = vmatprep.subr.mxu0 %v139
    %358 = vmatpush1.msra.mxu0 %v138
    %359 = vmatprep.subr.mxu0 %v141
    %360 = vmatpush1.msra.mxu0 %v140
    %361 = vmatprep.subr.mxu0 %v143
    %362 = vmatpush1.msra.mxu0 %v142
    %363 = vmatprep.subr.mxu0 %v145
    %364 = vmatpush1.msra.mxu0 %v144
    %365 = vmatprep.subr.mxu0 %v147
    %366 = vmatpush1.msra.mxu0 %v146
    %367 = vmatprep.subr.mxu0 %v149
    %368 = vmatpush1.msra.mxu0 %v148
    %369 = vmatprep.subr.mxu0 %v151
    %370 = vmatpush1.msra.mxu0 %v150
    %371 = vmatprep.subr.mxu0 %v153
    %372 = vmatpush1.msra.mxu0 %v152
    %373 = vmatprep.subr.mxu0 %v155
    %374 = vmatpush1.msra.mxu0 %v154
    %375 = vmatprep.subr.mxu0 %v157
    %376 = vmatpush1.msra.mxu0 %v156
    %377 = vmatprep.subr.mxu0 %v159
    %378 = vmatpush1.msra.mxu0 %v158
    %379 = vmatprep.subr.mxu0 %v161
    %380 = vmatpush1.msra.mxu0 %v160
    %381 = vmatprep.subr.mxu0 %v163
    %382 = vmatpush1.msra.mxu0 %v162
    %383 = vmatprep.subr.mxu0 %v165
    %384 = vmatpush1.msra.mxu0 %v164
    %385 = vmatprep.subr.mxu0 %v167
    %386 = vmatpush1.msra.mxu0 %v166
    %387 = vmatprep.subr.mxu0 %v169
    %388 = vmatpush1.msra.mxu0 %v168
    %389 = vmatprep.subr.mxu0 %v171
    %390 = vmatpush1.msra.mxu0 %v170
    %391 = vmatprep.subr.mxu0 %v173
    %392 = vmatpush1.msra.mxu0 %v172
    %393 = vmatprep.subr.mxu0 %v175
    %394 = vmatpush1.msra.mxu0 %v174
    %395 = vmatprep.mubr.f32.mxu0 %v44
    %396 = vmatmul.mubr.f32.gmra.mrb[0].mxu0 %v43
    %v397 = vpop.f32.mrb[0].mxu0
    %v398 = vadd.f32 %v327, %v397
    %v399 = vpop.f32.mrb[0].mxu0
    %v400 = vadd.f32 %v329, %v399
    %401 = vdwg.mxu0
    %402 = vmatprep.subr.mxu0 %v177
    %403 = vmatpush1.msra.mxu0 %v176
    %404 = vmatprep.subr.mxu0 %v179
    %405 = vmatpush1.msra.mxu0 %v178
    %406 = vmatprep.subr.mxu0 %v181
    %407 = vmatpush1.msra.mxu0 %v180
    %408 = vmatprep.subr.mxu0 %v183
    %409 = vmatpush1.msra.mxu0 %v182
    %410 = vmatprep.subr.mxu0 %v185
    %411 = vmatpush1.msra.mxu0 %v184
    %412 = vmatprep.subr.mxu0 %v187
    %413 = vmatpush1.msra.mxu0 %v186
    %414 = vmatprep.subr.mxu0 %v189
    %415 = vmatpush1.msra.mxu0 %v188
    %416 = vmatprep.subr.mxu0 %v191
    %417 = vmatpush1.msra.mxu0 %v190
    %418 = vmatprep.subr.mxu0 %v193
    %419 = vmatpush1.msra.mxu0 %v192
    %420 = vmatprep.subr.mxu0 %v195
    %421 = vmatpush1.msra.mxu0 %v194
    %422 = vmatprep.subr.mxu0 %v197
    %423 = vmatpush1.msra.mxu0 %v196
    %424 = vmatprep.subr.mxu0 %v199
    %425 = vmatpush1.msra.mxu0 %v198
    %426 = vmatprep.subr.mxu0 %v201
    %427 = vmatpush1.msra.mxu0 %v200
    %428 = vmatprep.subr.mxu0 %v203
    %429 = vmatpush1.msra.mxu0 %v202
    %430 = vmatprep.subr.mxu0 %v205
    %431 = vmatpush1.msra.mxu0 %v204
    %432 = vmatprep.subr.mxu0 %v207
    %433 = vmatpush1.msra.mxu0 %v206
    %434 = vmatprep.subr.mxu0 %v209
    %435 = vmatpush1.msra.mxu0 %v208
    %436 = vmatprep.subr.mxu0 %v211
    %437 = vmatpush1.msra.mxu0 %v210
    %438 = vmatprep.subr.mxu0 %v213
    %439 = vmatpush1.msra.mxu0 %v212
    %440 = vmatprep.subr.mxu0 %v215
    %441 = vmatpush1.msra.mxu0 %v214
    %442 = vmatprep.subr.mxu0 %v217
    %443 = vmatpush1.msra.mxu0 %v216
    %444 = vmatprep.subr.mxu0 %v219
    %445 = vmatpush1.msra.mxu0 %v218
    %446 = vmatprep.subr.mxu0 %v221
    %447 = vmatpush1.msra.mxu0 %v220
    %448 = vmatprep.subr.mxu0 %v223
    %449 = vmatpush1.msra.mxu0 %v222
    %450 = vmatprep.subr.mxu0 %v225
    %451 = vmatpush1.msra.mxu0 %v224
    %452 = vmatprep.subr.mxu0 %v227
    %453 = vmatpush1.msra.mxu0 %v226
    %454 = vmatprep.subr.mxu0 %v229
    %455 = vmatpush1.msra.mxu0 %v228
    %456 = vmatprep.subr.mxu0 %v231
    %457 = vmatpush1.msra.mxu0 %v230
    %458 = vmatprep.subr.mxu0 %v233
    %459 = vmatpush1.msra.mxu0 %v232
    %460 = vmatprep.subr.mxu0 %v235
    %461 = vmatpush1.msra.mxu0 %v234
    %462 = vmatprep.subr.mxu0 %v237
    %463 = vmatpush1.msra.mxu0 %v236
    %464 = vmatprep.subr.mxu0 %v239
    %465 = vmatpush1.msra.mxu0 %v238
    %466 = vmatprep.mubr.f32.mxu0 %v46
    %467 = vmatmul.mubr.f32.gmra.mrb[0].mxu0 %v45
    %v468 = vpop.f32.mrb[0].mxu0
    %v469 = vadd.f32 %v398, %v468
    %v470 = vpop.f32.mrb[0].mxu0
    %v471 = vadd.f32 %v400, %v470
    %472 = vdwg.mxu0
    %473 = vmatprep.subr.mxu0 %v241
    %474 = vmatpush1.msra.mxu0 %v240
    %475 = vmatprep.subr.mxu0 %v243
    %476 = vmatpush1.msra.mxu0 %v242
    %477 = vmatprep.subr.mxu0 0.0
    %478 = vmatpush1.msra.mxu0 0.0
    %479 = vmatprep.subr.mxu0 0.0
    %480 = vmatpush1.msra.mxu0 0.0
    %481 = vmatprep.subr.mxu0 0.0
    %482 = vmatpush1.msra.mxu0 0.0
    %483 = vmatprep.subr.mxu0 0.0
    %484 = vmatpush1.msra.mxu0 0.0
    %485 = vmatprep.subr.mxu0 0.0
    %486 = vmatpush1.msra.mxu0 0.0
    %487 = vmatprep.subr.mxu0 0.0
    %488 = vmatpush1.msra.mxu0 0.0
    %489 = vmatprep.subr.mxu0 0.0
    %490 = vmatpush1.msra.mxu0 0.0
    %491 = vmatprep.subr.mxu0 0.0
    %492 = vmatpush1.msra.mxu0 0.0
    %493 = vmatprep.subr.mxu0 0.0
    %494 = vmatpush1.msra.mxu0 0.0
    %495 = vmatprep.subr.mxu0 0.0
    %496 = vmatpush1.msra.mxu0 0.0
    %497 = vmatprep.subr.mxu0 0.0
    %498 = vmatpush1.msra.mxu0 0.0
    %499 = vmatprep.subr.mxu0 0.0
    %500 = vmatpush1.msra.mxu0 0.0
    %501 = vmatprep.subr.mxu0 0.0
    %502 = vmatpush1.msra.mxu0 0.0
    %503 = vmatprep.subr.mxu0 0.0
    %504 = vmatpush1.msra.mxu0 0.0
    %505 = vmatprep.subr.mxu0 0.0
    %506 = vmatpush1.msra.mxu0 0.0
    %507 = vmatprep.subr.mxu0 0.0
    %508 = vmatpush1.msra.mxu0 0.0
    %509 = vmatprep.subr.mxu0 0.0
    %510 = vmatpush1.msra.mxu0 0.0
    %511 = vmatprep.subr.mxu0 0.0
    %512 = vmatpush1.msra.mxu0 0.0
    %513 = vmatprep.subr.mxu0 0.0
    %514 = vmatpush1.msra.mxu0 0.0
    %515 = vmatprep.subr.mxu0 0.0
    %516 = vmatpush1.msra.mxu0 0.0
    %517 = vmatprep.subr.mxu0 0.0
    %518 = vmatpush1.msra.mxu0 0.0
    %519 = vmatprep.subr.mxu0 0.0
    %520 = vmatpush1.msra.mxu0 0.0
    %521 = vmatprep.subr.mxu0 0.0
    %522 = vmatpush1.msra.mxu0 0.0
    %523 = vmatprep.subr.mxu0 0.0
    %524 = vmatpush1.msra.mxu0 0.0
    %525 = vmatprep.subr.mxu0 0.0
    %526 = vmatpush1.msra.mxu0 0.0
    %527 = vmatprep.subr.mxu0 0.0
    %528 = vmatpush1.msra.mxu0 0.0
    %529 = vmatprep.subr.mxu0 0.0
    %530 = vmatpush1.msra.mxu0 0.0
    %531 = vmatprep.subr.mxu0 0.0
    %532 = vmatpush1.msra.mxu0 0.0
    %533 = vmatprep.subr.mxu0 0.0
    %534 = vmatpush1.msra.mxu0 0.0
    %535 = vmatprep.subr.mxu0 0.0
    %536 = vmatpush1.msra.mxu0 0.0
    %537 = vmatprep.mubr.f32.mxu0 0.0
    %538 = vmatmul.mubr.f32.gmra.mrb[0].mxu0 %v258
    %v539 = vpop.f32.mrb[0].mxu0
    %v540 = vadd.f32 %v469, %v539
    %v541 = vpop.f32.mrb[0].mxu0
    %v542 = vadd.f32 %v471, %v541
    %543 = vdwg.mxu0
    %v544 = vmax.f32 %v540, 0.0
    %v545 = vmax.f32 %v542, 0.0
    %v546 = vld [vmem:[%s3] sm:$0xff]
    %v547 = vld [vmem:[%s3 + $0x8] sm:$0xff]
    %v548 = vld [vmem:[%s3 + $0x10] sm:$0xff]
    %v549 = vld [vmem:[%s3 + $0x18] sm:$0xff]
    %v550 = vld [vmem:[%s3 + $0x20] sm:$0xff]
    %v551 = vld [vmem:[%s3 + $0x28] sm:$0xff]
    %v552 = vld [vmem:[%s3 + $0x30] sm:$0xff]
    %v553 = vld [vmem:[%s3 + $0x38] sm:$0xff]
    %v554 = vld [vmem:[%s3 + $0x40] sm:$0xff]
    %v555 = vld [vmem:[%s3 + $0x48] sm:$0xff]
    %v556 = vld [vmem:[%s3 + $0x50] sm:$0xff]
    %v557 = vld [vmem:[%s3 + $0x58] sm:$0xff]
    %v558 = vld [vmem:[%s3 + $0x60] sm:$0xff]
    %v559 = vld [vmem:[%s3 + $0x68] sm:$0xff]
    %v560 = vld [vmem:[%s3 + $0x70] sm:$0xff]
    %v561 = vld [vmem:[%s3 + $0x78] sm:$0xff]
    %v562 = vld [vmem:[%s3 + $0x80] sm:$0xff]
    %v563 = vld [vmem:[%s3 + $0x88] sm:$0xff]
    %v564 = vld [vmem:[%s3 + $0x90] sm:$0xff]
    %v565 = vld [vmem:[%s3 + $0x98] sm:$0xff]
    %v566 = vld [vmem:[%s3 + $0xa0] sm:$0xff]
    %v567 = vld [vmem:[%s3 + $0xa8] sm:$0xff]
    %v568 = vld [vmem:[%s3 + $0xb0] sm:$0xff]
    %v569 = vld [vmem:[%s3 + $0xb8] sm:$0xff]
    %v570 = vld [vmem:[%s3 + $0xc0] sm:$0xff]
    %v571 = vld [vmem:[%s3 + $0xc8] sm:$0xff]
    %v572 = vld [vmem:[%s3 + $0xd0] sm:$0xff]
    %v573 = vld [vmem:[%s3 + $0xd8] sm:$0xff]
    %v574 = vld [vmem:[%s3 + $0xe0] sm:$0xff]
    %v575 = vld [vmem:[%s3 + $0xe8] sm:$0xff]
    %v576 = vld [vmem:[%s3 + $0xf0] sm:$0xff]
    %v577 = vld [vmem:[%s3 + $0xf8] sm:$0xff]
    %v578 = vld [vmem:[%s4] sm:$0x1]
    %v580 = vlaneseq
    %v581 = vshrl.u32 %v580, 7
    %v582 = vsub.s32 0, %v581
    %v583 = vrot.slane %v578, %v582
    %585 = vmatprep.subr.mxu0 0.0
    %586 = vmatpush1.msra.mxu0 %v546
    %587 = vmatprep.subr.mxu0 0.0
    %588 = vmatpush1.msra.mxu0 %v547
    %589 = vmatprep.subr.mxu0 0.0
    %590 = vmatpush1.msra.mxu0 %v548
    %591 = vmatprep.subr.mxu0 0.0
    %592 = vmatpush1.msra.mxu0 %v549
    %593 = vmatprep.subr.mxu0 0.0
    %594 = vmatpush1.msra.mxu0 %v550
    %595 = vmatprep.subr.mxu0 0.0
    %596 = vmatpush1.msra.mxu0 %v551
    %597 = vmatprep.subr.mxu0 0.0
    %598 = vmatpush1.msra.mxu0 %v552
    %599 = vmatprep.subr.mxu0 0.0
    %600 = vmatpush1.msra.mxu0 %v553
    %601 = vmatprep.subr.mxu0 0.0
    %602 = vmatpush1.msra.mxu0 %v554
    %603 = vmatprep.subr.mxu0 0.0
    %604 = vmatpush1.msra.mxu0 %v555
    %605 = vmatprep.subr.mxu0 0.0
    %606 = vmatpush1.msra.mxu0 %v556
    %607 = vmatprep.subr.mxu0 0.0
    %608 = vmatpush1.msra.mxu0 %v557
    %609 = vmatprep.subr.mxu0 0.0
    %610 = vmatpush1.msra.mxu0 %v558
    %611 = vmatprep.subr.mxu0 0.0
    %612 = vmatpush1.msra.mxu0 %v559
    %613 = vmatprep.subr.mxu0 0.0
    %614 = vmatpush1.msra.mxu0 %v560
    %615 = vmatprep.subr.mxu0 0.0
    %616 = vmatpush1.msra.mxu0 %v561
    %617 = vmatprep.subr.mxu0 0.0
    %618 = vmatpush1.msra.mxu0 %v562
    %619 = vmatprep.subr.mxu0 0.0
    %620 = vmatpush1.msra.mxu0 %v563
    %621 = vmatprep.subr.mxu0 0.0
    %622 = vmatpush1.msra.mxu0 %v564
    %623 = vmatprep.subr.mxu0 0.0
    %624 = vmatpush1.msra.mxu0 %v565
    %625 = vmatprep.subr.mxu0 0.0
    %626 = vmatpush1.msra.mxu0 %v566
    %627 = vmatprep.subr.mxu0 0.0
    %628 = vmatpush1.msra.mxu0 %v567
    %629 = vmatprep.subr.mxu0 0.0
    %630 = vmatpush1.msra.mxu0 %v568
    %631 = vmatprep.subr.mxu0 0.0
    %632 = vmatpush1.msra.mxu0 %v569
    %633 = vmatprep.subr.mxu0 0.0
    %634 = vmatpush1.msra.mxu0 %v570
    %635 = vmatprep.subr.mxu0 0.0
    %636 = vmatpush1.msra.mxu0 %v571
    %637 = vmatprep.subr.mxu0 0.0
    %638 = vmatpush1.msra.mxu0 %v572
    %639 = vmatprep.subr.mxu0 0.0
    %640 = vmatpush1.msra.mxu0 %v573
    %641 = vmatprep.subr.mxu0 0.0
    %642 = vmatpush1.msra.mxu0 %v574
    %643 = vmatprep.subr.mxu0 0.0
    %644 = vmatpush1.msra.mxu0 %v575
    %645 = vmatprep.subr.mxu0 0.0
    %646 = vmatpush1.msra.mxu0 %v576
    %647 = vmatprep.subr.mxu0 0.0
    %648 = vmatpush1.msra.mxu0 %v577
    %649 = vmatprep.mubr.f32.mxu0 %v545
    %650 = vmatmul.mubr.f32.gmra.mrb[0].mxu0 %v544
    %v651 = vpop.f32.mrb[0].mxu0
    %v652 = vadd.f32 %v583, %v651
    %v653 = vpop.f32.mrb[0].mxu0
    %654 = vdwg.mxu0
    %v655 = vmax.f32 %v652, 0.0
    %v656 = vld [vmem:[%s5] sm:$0xff]
    %v657 = vld [vmem:[%s5 + $0x8] sm:$0xff]
    %v658 = vld [vmem:[%s5 + $0x10] sm:$0xff]
    %v659 = vld [vmem:[%s5 + $0x18] sm:$0xff]
    %v660 = vld [vmem:[%s5 + $0x20] sm:$0xff]
    %v661 = vld [vmem:[%s5 + $0x28] sm:$0xff]
    %v662 = vld [vmem:[%s5 + $0x30] sm:$0xff]
    %v663 = vld [vmem:[%s5 + $0x38] sm:$0xff]
    %v664 = vld [vmem:[%s5 + $0x40] sm:$0xff]
    %v665 = vld [vmem:[%s5 + $0x48] sm:$0xff]
    %v666 = vld [vmem:[%s5 + $0x50] sm:$0xff]
    %v667 = vld [vmem:[%s5 + $0x58] sm:$0xff]
    %v668 = vld [vmem:[%s5 + $0x60] sm:$0xff]
    %v669 = vld [vmem:[%s5 + $0x68] sm:$0xff]
    %v670 = vld [vmem:[%s5 + $0x70] sm:$0xff]
    %v671 = vld [vmem:[%s5 + $0x78] sm:$0xff]
    %v672 = vld [vmem:[%s6] sm:$0x1]
    %v674 = vlaneseq
    %v675 = vshrl.u32 %v674, 7
    %v676 = vsub.s32 0, %v675
    %v677 = vrot.slane %v672, %v676
    %679 = vmatprep.subr.mxu0 0.0
    %680 = vmatpush1.msra.mxu0 %v656
    %681 = vmatprep.subr.mxu0 0.0
    %682 = vmatpush1.msra.mxu0 %v657
    %683 = vmatprep.subr.mxu0 0.0
    %684 = vmatpush1.msra.mxu0 %v658
    %685 = vmatprep.subr.mxu0 0.0
    %686 = vmatpush1.msra.mxu0 %v659
    %687 = vmatprep.subr.mxu0 0.0
    %688 = vmatpush1.msra.mxu0 %v660
    %689 = vmatprep.subr.mxu0 0.0
    %690 = vmatpush1.msra.mxu0 %v661
    %691 = vmatprep.subr.mxu0 0.0
    %692 = vmatpush1.msra.mxu0 %v662
    %693 = vmatprep.subr.mxu0 0.0
    %694 = vmatpush1.msra.mxu0 %v663
    %695 = vmatprep.subr.mxu0 0.0
    %696 = vmatpush1.msra.mxu0 %v664
    %697 = vmatprep.subr.mxu0 0.0
    %698 = vmatpush1.msra.mxu0 %v665
    %699 = vmatprep.subr.mxu0 0.0
    %700 = vmatpush1.msra.mxu0 %v666
    %701 = vmatprep.subr.mxu0 0.0
    %702 = vmatpush1.msra.mxu0 %v667
    %703 = vmatprep.subr.mxu0 0.0
    %704 = vmatpush1.msra.mxu0 %v668
    %705 = vmatprep.subr.mxu0 0.0
    %706 = vmatpush1.msra.mxu0 %v669
    %707 = vmatprep.subr.mxu0 0.0
    %708 = vmatpush1.msra.mxu0 %v670
    %709 = vmatprep.subr.mxu0 0.0
    %710 = vmatpush1.msra.mxu0 %v671
    %711 = vmatprep.subr.mxu0 0.0
    %712 = vmatpush1.msra.mxu0 0.0
    %713 = vmatprep.subr.mxu0 0.0
    %714 = vmatpush1.msra.mxu0 0.0
    %715 = vmatprep.subr.mxu0 0.0
    %716 = vmatpush1.msra.mxu0 0.0
    %717 = vmatprep.subr.mxu0 0.0
    %718 = vmatpush1.msra.mxu0 0.0
    %719 = vmatprep.subr.mxu0 0.0
    %720 = vmatpush1.msra.mxu0 0.0
    %721 = vmatprep.subr.mxu0 0.0
    %722 = vmatpush1.msra.mxu0 0.0
    %723 = vmatprep.subr.mxu0 0.0
    %724 = vmatpush1.msra.mxu0 0.0
    %725 = vmatprep.subr.mxu0 0.0
    %726 = vmatpush1.msra.mxu0 0.0
    %727 = vmatprep.subr.mxu0 0.0
    %728 = vmatpush1.msra.mxu0 0.0
    %729 = vmatprep.subr.mxu0 0.0
    %730 = vmatpush1.msra.mxu0 0.0
    %731 = vmatprep.subr.mxu0 0.0
    %732 = vmatpush1.msra.mxu0 0.0
    %733 = vmatprep.subr.mxu0 0.0
    %734 = vmatpush1.msra.mxu0 0.0
    %735 = vmatprep.subr.mxu0 0.0
    %736 = vmatpush1.msra.mxu0 0.0
    %737 = vmatprep.subr.mxu0 0.0
    %738 = vmatpush1.msra.mxu0 0.0
    %739 = vmatprep.subr.mxu0 0.0
    %740 = vmatpush1.msra.mxu0 0.0
    %741 = vmatprep.subr.mxu0 0.0
    %742 = vmatpush1.msra.mxu0 0.0
    %743 = vmatprep.mubr.f32.mxu0 0.0
    %744 = vmatmul.mubr.f32.gmra.mrb[0].mxu0 %v655
    %v745 = vpop.f32.mrb[0].mxu0
    %v746 = vadd.f32 %v677, %v745
    %v747 = vpop.f32.mrb[0].mxu0
    %748 = vdwg.mxu0
    %vm749 = vcmask 80896
    %750 = vst.msk [vmem:[#allocation5] sm:$0xff] %vm749, %v746
    // Predicated region
    $region34: #{mlp_forward.1} parent=1 // pred_check
      _
    $region35: #{mlp_forward.1} parent=1 // pred_check_branch
      %752 = sbr.rel (0) target = $region37
    $region36: #{mlp_forward.1} parent=1 // pred_region
      %s754 = ssub.s32 128, 128
      %755 = vsyncadd [#allocation4], %s754
      %s757 = sshll.u32 [#allocation5], 4
      %s758 = int_to_ptr.vmem [resolvable:$true] %s757
      %760 = dma.vmem_to_hbm [thread:$0]  %s758, 128, %s7, [#allocation4]
    $region37: #{mlp_forward.1} parent=1 // pred_fallthru
      _
    // Predicated region
    $region38: #{mlp_forward.1} parent=1 // pred_check
      _
    $region39: #{mlp_forward.1} parent=1 // pred_check_branch
      %762 = sbr.rel (0) target = $region41
    $region40: #{mlp_forward.1} parent=1 // pred_region
      %763 = dma.done [#allocation4], 128
    $region41: #{mlp_forward.1} parent=1 // pred_fallthru
      _
    %764 = vsyncpa [#allocation3], 1
    %765 = vsyncpa [#allocation4], 1

</llo_original>
